<compile_context>
chip_gen: v7x
topology: tpu7x:2x2x1
jax: 0.10.0
libtpu: 0.0.40
codegen_flags: <defaults>
</compile_context>

<pallas_src>
import jax
import jax.numpy as jnp
from jax.experimental import pallas as pl
from jax.experimental.pallas import tpu as pltpu


# ----------------------------- Pallas kernel ------------------------------- #

def _fused_head_kernel(x_ref, w0_ref, b0_ref, w1_ref, b1_ref,
                       wr_ref, br_ref, lbl_ref, yreg_ref, out_ref):
    """Fused class-MLP + reg-Linear heads on the CLS token, with both losses.

    x_ref:      [bb, H]      CLS-token activations
    w0/b0/w1/b1 MLP head params (H->HH->C_CLS)
    wr/br       Linear head params (H->C_REG)
    lbl_ref:    [bb, 1]      int32 class labels
    yreg_ref:   [bb, C_REG]  regression targets
    out_ref:    [bb, OUT_W]  lane-dense packed output slab
    """
    c_cls = w1_ref.shape[1]
    c_reg = wr_ref.shape[1]
    out_w = out_ref.shape[1]
    bb = x_ref.shape[0]

    x = x_ref[...]                                                  # [bb, H]

    # --- "class" head: fc0 + ReLU + fc1 (MultiLayerPerceptron) ---
    h = jnp.dot(x, w0_ref[...], preferred_element_type=jnp.float32) + b0_ref[...]
    h = jnp.maximum(h, 0.0)
    logits_c = (jnp.dot(h, w1_ref[...], preferred_element_type=jnp.float32)
                + b1_ref[...])                                      # [bb, C_CLS]

    # --- "reg" head: nn.Linear ---
    logits_r = (jnp.dot(x, wr_ref[...], preferred_element_type=jnp.float32)
                + br_ref[...])                                      # [bb, C_REG]

    # --- CrossEntropyLoss(reduction='none'): lse(logits) - logits[label] ---
    m = jnp.max(logits_c, axis=-1, keepdims=True)
    lse = jnp.log(jnp.sum(jnp.exp(logits_c - m), axis=-1, keepdims=True)) + m
    cls_iota = jax.lax.broadcasted_iota(jnp.int32, (bb, c_cls), 1)
    label_mask = cls_iota == lbl_ref[...]                           # [bb, C_CLS]
    picked = jnp.sum(jnp.where(label_mask, logits_c, 0.0),
                     axis=-1, keepdims=True)
    ce = lse - picked                                               # [bb, 1]

    # --- MSELoss(reduction='none') ---
    diff = logits_r - yreg_ref[...]
    mse = diff * diff                                               # [bb, C_REG]

    # --- pack into one lane-dense slab and do a single full store ---
    used = c_cls + 1 + 2 * c_reg
    pieces = [logits_c, ce, logits_r, mse]
    if out_w > used:
        pieces.append(jnp.zeros((bb, out_w - used), jnp.float32))
    out_ref[...] = jnp.concatenate(pieces, axis=-1)


# ------------------------------- wrapper ------------------------------------ #

def _round_up(v, m):
    return (v + m - 1) // m * m


def _pick_block_b(batch):
    """Largest batch tile (multiple of 8, dividing B) up to 512; else whole B."""
    if batch <= 8 or batch % 8 != 0:
        return batch
    for cand in (512, 256, 128, 64, 32, 16, 8):
        if batch % cand == 0:
            return cand
    return batch


def fused_heads(x_cls, w0, b0, w1, b1, wr, br, lbl, yreg):
    """Run the fused two-head kernel on CLS-token activations x_cls: [B, H]."""
    B, H = x_cls.shape
    HH = w0.shape[1]
    c_cls = w1.shape[1]
    c_reg = wr.shape[1]
    out_w = _round_up(c_cls + 1 + 2 * c_reg, 128)     # lane-dense output width

    bb = _pick_block_b(B)
    grid = (B // bb,)

    # weights / biases: full-array blocks, constant index map -> VMEM-resident
    def const2d(shape):
        return pl.BlockSpec(shape, lambda i: (0, 0))

    packed = pl.pallas_call(
        _fused_head_kernel,
        out_shape=jax.ShapeDtypeStruct((B, out_w), jnp.float32),
        grid=grid,
        in_specs=[
            pl.BlockSpec((bb, H), lambda i: (i, 0)),        # x_cls  (batch-tiled)
            const2d((H, HH)),                               # w0
            const2d((1, HH)),                               # b0
            const2d((HH, c_cls)),                           # w1
            const2d((1, c_cls)),                            # b1
            const2d((H, c_reg)),                            # w_reg
            const2d((1, c_reg)),                            # b_reg
            pl.BlockSpec((bb, 1), lambda i: (i, 0)),        # int32 class labels
            pl.BlockSpec((bb, c_reg), lambda i: (i, 0)),    # reg targets
        ],
        out_specs=pl.BlockSpec((bb, out_w), lambda i: (i, 0)),
        compiler_params=pltpu.CompilerParams(
            dimension_semantics=("parallel",)),
    )(x_cls, w0, b0, w1, b1, wr, br, lbl, yreg)
    return packed


def multivit_head_forward(params, pixel_values, labels):
    """Equivalent of MultiViTHead.forward for adaptors = [class: mlp+xent, reg: linear+mse]."""
    # Heads are token-wise and only outputs[:, 0, :] is kept -> slice CLS token
    # up front so only the token-0 slab feeds the kernel (no full [B,S,H] work).
    x_cls = pixel_values[:, 0, :]

    pc, pr = params["class"], params["reg"]
    c_cls = pc["w1"].shape[1]
    c_reg = pr["w"].shape[1]

    lbl = labels["class"].astype(jnp.int32)            # [B, 1]

    packed = fused_heads(x_cls, pc["w0"], pc["b0"], pc["w1"], pc["b1"],
                         pr["w"], pr["b"], lbl, labels["reg"])

    logits_c = packed[:, :c_cls]
    ce = packed[:, c_cls:c_cls + 1]                            # [B, 1]
    logits_r = packed[:, c_cls + 1:c_cls + 1 + c_reg]
    mse = packed[:, c_cls + 1 + c_reg:c_cls + 1 + 2 * c_reg]   # [B, C_REG]

    overall_loss = ce.mean() + mse.mean()
    return {"loss": overall_loss,
            "logits": {"class": logits_c, "reg": logits_r},
            "losses": {"class": ce, "reg": mse}}


# ------------------------------ reference (JAX) ------------------------------ #

def _reference(params, x, labels):
    p = params["class"]
    h = jnp.maximum(x @ p["w0"] + p["b0"][0], 0.0)
    out_c = (h @ p["w1"] + p["b1"][0])[:, 0, :]
    lse = jax.scipy.special.logsumexp(out_c, axis=-1, keepdims=True)
    lbl = labels["class"][:, 0]
    loss_c = lse - jnp.take_along_axis(out_c, lbl[:, None], axis=-1)
    p = params["reg"]
    out_r = (x @ p["w"] + p["b"][0])[:, 0, :]
    loss_r = (out_r - labels["reg"]) ** 2
    return loss_c.mean() + loss_r.mean(), out_c, out_r, loss_c, loss_r


# --------------------------------- main ------------------------------------- #

if __name__ == "__main__":
    B, S, H = 2, 8, 32      # batch, seq tokens, hidden_size
    HH = 64                 # MLP hidden_channels
    C_CLS = 16              # MLP output_channels (num classes, xent)
    C_REG = 8               # Linear out_features (mse)

    key = jax.random.PRNGKey(0)
    ks = jax.random.split(key, 8)

    pixel_values = jax.random.normal(ks[0], (B, S, H), jnp.float32)
    labels = {
        "class": jax.random.randint(ks[1], (B, 1), 0, C_CLS, jnp.int32),
        "reg": jax.random.normal(ks[2], (B, C_REG), jnp.float32),
    }

    params = {
        "class": {  # MultiLayerPerceptron(H, HH, 1, C_CLS)
            "w0": 0.05 * jax.random.normal(ks[3], (H, HH), jnp.float32),
            "b0": 0.01 * jnp.ones((1, HH), jnp.float32),
            "w1": 0.05 * jax.random.normal(ks[4], (HH, C_CLS), jnp.float32),
            "b1": 0.01 * jnp.ones((1, C_CLS), jnp.float32),
        },
        "reg": {    # nn.Linear(H, C_REG)
            "w": 0.05 * jax.random.normal(ks[5], (H, C_REG), jnp.float32),
            "b": 0.01 * jnp.ones((1, C_REG), jnp.float32),
        },
    }

    out = multivit_head_forward(params, pixel_values, labels)
    jax.block_until_ready(out)

    # sanity check vs pure-JAX reference
    ref_loss, ref_lc, ref_lr, ref_ce, ref_mse = _reference(params, pixel_values, labels)
    assert jnp.allclose(out["loss"], ref_loss, atol=1e-4), (out["loss"], ref_loss)
    assert jnp.allclose(out["logits"]["class"], ref_lc, atol=1e-4)
    assert jnp.allclose(out["logits"]["reg"], ref_lr, atol=1e-4)
    assert jnp.allclose(out["losses"]["class"], ref_ce, atol=1e-4)
    assert jnp.allclose(out["losses"]["reg"], ref_mse, atol=1e-4)

    print("KERNEL_OK")
</pallas_src>

<mosaic_0001>
module attributes {stable_mosaic.version = 11 : i64} {
  func.func @_fused_head_kernel(%arg0: i32, %arg1: memref<2x32xf32, #tpu.memory_space<vmem>>, %arg2: memref<32x64xf32, #tpu.memory_space<vmem>>, %arg3: memref<1x64xf32, #tpu.memory_space<vmem>>, %arg4: memref<64x16xf32, #tpu.memory_space<vmem>>, %arg5: memref<1x16xf32, #tpu.memory_space<vmem>>, %arg6: memref<32x8xf32, #tpu.memory_space<vmem>>, %arg7: memref<1x8xf32, #tpu.memory_space<vmem>>, %arg8: memref<2x1xi32, #tpu.memory_space<vmem>>, %arg9: memref<2x8xf32, #tpu.memory_space<vmem>>, %arg10: memref<2x128xf32, #tpu.memory_space<vmem>>) attributes {dimension_semantics = [#tpu.dimension_semantics<parallel>], iteration_bounds = array<i64: 1>, scalar_prefetch = 0 : i64, scratch_operands = 0 : i64, tpu.core_type = #tpu.core_type<tc>, window_params = [{transform_indices = @transform_0, window_bounds = array<i64: 2, 32>}, {pipeline_mode = #tpu.pipeline_mode<synchronous>, transform_indices = @transform_1, window_bounds = array<i64: 32, 64>}, {pipeline_mode = #tpu.pipeline_mode<synchronous>, transform_indices = @transform_2, window_bounds = array<i64: 1, 64>}, {pipeline_mode = #tpu.pipeline_mode<synchronous>, transform_indices = @transform_3, window_bounds = array<i64: 64, 16>}, {pipeline_mode = #tpu.pipeline_mode<synchronous>, transform_indices = @transform_4, window_bounds = array<i64: 1, 16>}, {pipeline_mode = #tpu.pipeline_mode<synchronous>, transform_indices = @transform_5, window_bounds = array<i64: 32, 8>}, {pipeline_mode = #tpu.pipeline_mode<synchronous>, transform_indices = @transform_6, window_bounds = array<i64: 1, 8>}, {transform_indices = @transform_7, window_bounds = array<i64: 2, 1>}, {transform_indices = @transform_8, window_bounds = array<i64: 2, 8>}, {transform_indices = @transform_9, window_bounds = array<i64: 2, 128>}]} {
    %c0 = arith.constant 0 : index
    %c0_0 = arith.constant 0 : index
    %0 = vector.load %arg1[%c0, %c0_0] : memref<2x32xf32, #tpu.memory_space<vmem>>, vector<2x32xf32>
    %c0_1 = arith.constant 0 : index
    %c0_2 = arith.constant 0 : index
    %1 = vector.load %arg2[%c0_1, %c0_2] : memref<32x64xf32, #tpu.memory_space<vmem>>, vector<32x64xf32>
    %cst = arith.constant dense<0.000000e+00> : vector<2x64xf32>
    %2 = tpu.matmul %0, %1, %cst {dimension_numbers = #tpu.dot_dimension_numbers<[1], [0], [0], [1], [0, 0, 1, 1], [], []>} : vector<2x32xf32>, vector<32x64xf32>, vector<2x64xf32> -> vector<2x64xf32>
    %c0_3 = arith.constant 0 : index
    %c0_4 = arith.constant 0 : index
    %3 = vector.load %arg3[%c0_3, %c0_4] : memref<1x64xf32, #tpu.memory_space<vmem>>, vector<1x64xf32>
    %4 = vector.broadcast %3 : vector<1x64xf32> to vector<2x64xf32>
    %5 = arith.addf %2, %4 : vector<2x64xf32>
    %cst_5 = arith.constant 0.000000e+00 : f32
    %6 = vector.broadcast %cst_5 : f32 to vector<2x64xf32>
    %7 = arith.maximumf %5, %6 : vector<2x64xf32>
    %c0_6 = arith.constant 0 : index
    %c0_7 = arith.constant 0 : index
    %8 = vector.load %arg4[%c0_6, %c0_7] : memref<64x16xf32, #tpu.memory_space<vmem>>, vector<64x16xf32>
    %cst_8 = arith.constant dense<0.000000e+00> : vector<2x16xf32>
    %9 = tpu.matmul %7, %8, %cst_8 {dimension_numbers = #tpu.dot_dimension_numbers<[1], [0], [0], [1], [0, 0, 1, 1], [], []>} : vector<2x64xf32>, vector<64x16xf32>, vector<2x16xf32> -> vector<2x16xf32>
    %c0_9 = arith.constant 0 : index
    %c0_10 = arith.constant 0 : index
    %10 = vector.load %arg5[%c0_9, %c0_10] : memref<1x16xf32, #tpu.memory_space<vmem>>, vector<1x16xf32>
    %11 = vector.broadcast %10 : vector<1x16xf32> to vector<2x16xf32>
    %12 = arith.addf %9, %11 : vector<2x16xf32>
    %c0_11 = arith.constant 0 : index
    %c0_12 = arith.constant 0 : index
    %13 = vector.load %arg6[%c0_11, %c0_12] : memref<32x8xf32, #tpu.memory_space<vmem>>, vector<32x8xf32>
    %cst_13 = arith.constant dense<0.000000e+00> : vector<2x8xf32>
    %14 = tpu.matmul %0, %13, %cst_13 {dimension_numbers = #tpu.dot_dimension_numbers<[1], [0], [0], [1], [0, 0, 1, 1], [], []>} : vector<2x32xf32>, vector<32x8xf32>, vector<2x8xf32> -> vector<2x8xf32>
    %c0_14 = arith.constant 0 : index
    %c0_15 = arith.constant 0 : index
    %15 = vector.load %arg7[%c0_14, %c0_15] : memref<1x8xf32, #tpu.memory_space<vmem>>, vector<1x8xf32>
    %16 = vector.broadcast %15 : vector<1x8xf32> to vector<2x8xf32>
    %17 = arith.addf %14, %16 : vector<2x8xf32>
    %cst_16 = arith.constant dense<0xFF800000> : vector<2xf32>
    %18 = vector.multi_reduction <maximumf>, %12, %cst_16 [1] : vector<2x16xf32> to vector<2xf32>
    %19 = vector.shape_cast %18 : vector<2xf32> to vector<2x1xf32>
    %20 = vector.broadcast %19 : vector<2x1xf32> to vector<2x16xf32>
    %21 = arith.subf %12, %20 : vector<2x16xf32>
    %22 = math.exp %21 : vector<2x16xf32>
    %cst_17 = arith.constant dense<0.000000e+00> : vector<2xf32>
    %23 = vector.multi_reduction <add>, %22, %cst_17 [1] : vector<2x16xf32> to vector<2xf32>
    %24 = vector.shape_cast %23 : vector<2xf32> to vector<2x1xf32>
    %25 = math.log %24 : vector<2x1xf32>
    %26 = arith.addf %25, %19 : vector<2x1xf32>
    %27 = tpu.iota {dimensions = array<i32: 1>} : vector<2x16xi32>
    %c0_18 = arith.constant 0 : index
    %c0_19 = arith.constant 0 : index
    %28 = vector.load %arg8[%c0_18, %c0_19] : memref<2x1xi32, #tpu.memory_space<vmem>>, vector<2x1xi32>
    %29 = vector.broadcast %28 : vector<2x1xi32> to vector<2x16xi32>
    %30 = arith.cmpi eq, %27, %29 : vector<2x16xi32>
    %cst_20 = arith.constant 0.000000e+00 : f32
    %31 = vector.broadcast %cst_20 : f32 to vector<2x16xf32>
    %32 = arith.select %30, %12, %31 : vector<2x16xi1>, vector<2x16xf32>
    %cst_21 = arith.constant dense<0.000000e+00> : vector<2xf32>
    %33 = vector.multi_reduction <add>, %32, %cst_21 [1] : vector<2x16xf32> to vector<2xf32>
    %34 = vector.shape_cast %33 : vector<2xf32> to vector<2x1xf32>
    %35 = arith.subf %26, %34 : vector<2x1xf32>
    %c0_22 = arith.constant 0 : index
    %c0_23 = arith.constant 0 : index
    %36 = vector.load %arg9[%c0_22, %c0_23] : memref<2x8xf32, #tpu.memory_space<vmem>>, vector<2x8xf32>
    %37 = arith.subf %17, %36 : vector<2x8xf32>
    %38 = arith.mulf %37, %37 : vector<2x8xf32>
    %cst_24 = arith.constant 0.000000e+00 : f32
    %39 = vector.broadcast %cst_24 : f32 to vector<2x95xf32>
    %40 = tpu.concatenate %12, %35, %17, %38, %39 in 1 : vector<2x16xf32>, vector<2x1xf32>, vector<2x8xf32>, vector<2x8xf32>, vector<2x95xf32> -> vector<2x128xf32>
    %c0_25 = arith.constant 0 : index
    %c0_26 = arith.constant 0 : index
    %41 = vector.load %arg10[%c0_25, %c0_26] : memref<2x128xf32, #tpu.memory_space<vmem>>, vector<2x128xf32>
    tpu.vector_store %arg10[%c0_25, %c0_26], %40 {strides = array<i32>} : memref<2x128xf32, #tpu.memory_space<vmem>>, vector<2x128xf32>,
    return
  }
  func.func @transform_0(%arg0: i32) -> (i32, i32) {
    %c0_i32 = arith.constant 0 : i32
    %c0_i32_0 = arith.constant 0 : i32
    return %arg0, %c0_i32 : i32, i32
  }
  func.func @transform_1(%arg0: i32) -> (i32, i32) {
    %c0_i32 = arith.constant 0 : i32
    %c0_i32_0 = arith.constant 0 : i32
    %c0_i32_1 = arith.constant 0 : i32
    return %c0_i32, %c0_i32_0 : i32, i32
  }
  func.func @transform_2(%arg0: i32) -> (i32, i32) {
    %c0_i32 = arith.constant 0 : i32
    %c0_i32_0 = arith.constant 0 : i32
    %c0_i32_1 = arith.constant 0 : i32
    return %c0_i32, %c0_i32_0 : i32, i32
  }
  func.func @transform_3(%arg0: i32) -> (i32, i32) {
    %c0_i32 = arith.constant 0 : i32
    %c0_i32_0 = arith.constant 0 : i32
    %c0_i32_1 = arith.constant 0 : i32
    return %c0_i32, %c0_i32_0 : i32, i32
  }
  func.func @transform_4(%arg0: i32) -> (i32, i32) {
    %c0_i32 = arith.constant 0 : i32
    %c0_i32_0 = arith.constant 0 : i32
    %c0_i32_1 = arith.constant 0 : i32
    return %c0_i32, %c0_i32_0 : i32, i32
  }
  func.func @transform_5(%arg0: i32) -> (i32, i32) {
    %c0_i32 = arith.constant 0 : i32
    %c0_i32_0 = arith.constant 0 : i32
    %c0_i32_1 = arith.constant 0 : i32
    return %c0_i32, %c0_i32_0 : i32, i32
  }
  func.func @transform_6(%arg0: i32) -> (i32, i32) {
    %c0_i32 = arith.constant 0 : i32
    %c0_i32_0 = arith.constant 0 : i32
    %c0_i32_1 = arith.constant 0 : i32
    return %c0_i32, %c0_i32_0 : i32, i32
  }
  func.func @transform_7(%arg0: i32) -> (i32, i32) {
    %c0_i32 = arith.constant 0 : i32
    %c0_i32_0 = arith.constant 0 : i32
    return %arg0, %c0_i32 : i32, i32
  }
  func.func @transform_8(%arg0: i32) -> (i32, i32) {
    %c0_i32 = arith.constant 0 : i32
    %c0_i32_0 = arith.constant 0 : i32
    return %arg0, %c0_i32 : i32, i32
  }
  func.func @transform_9(%arg0: i32) -> (i32, i32) {
    %c0_i32 = arith.constant 0 : i32
    %c0_i32_0 = arith.constant 0 : i32
    return %arg0, %c0_i32 : i32, i32
  }
}

</mosaic_0001>

<llo_original>
// kernel: tpu_custom_call.1
$region0: #{tpu_custom_call.1}
  #allocation0 [shape = 'u32[]', space=smem, size = 0x4, offset = 0x4, fixed_abs, tag = 'smem constant byte address 0x4 - core index']
  #allocation1 [shape = 'u32[144,128]{1,0:T(1,128)}', space=vmem, size = 0x12000, scoped, tag = 'internal scratch']
  %s0 = inlined_call_operand.vmem [shape: f32[2,32], index: 0, kind: input, shape index: {}]
  %s1 = inlined_call_operand.vmem [shape: f32[32,64], index: 1, kind: input, shape index: {}]
  %s2 = inlined_call_operand.vmem [shape: f32[1,64], index: 2, kind: input, shape index: {}]
  %s3 = inlined_call_operand.vmem [shape: f32[64,16], index: 3, kind: input, shape index: {}]
  %s4 = inlined_call_operand.vmem [shape: f32[1,16], index: 4, kind: input, shape index: {}]
  %s5 = inlined_call_operand.vmem [shape: f32[32,8], index: 5, kind: input, shape index: {}]
  %s6 = inlined_call_operand.vmem [shape: f32[1,8], index: 6, kind: input, shape index: {}]
  %s7 = inlined_call_operand.vmem [shape: s32[2,1], index: 7, kind: input, shape index: {}]
  %s8 = inlined_call_operand.vmem [shape: f32[2,8], index: 8, kind: input, shape index: {}]
  %s9 = inlined_call_operand.hbm [shape: f32[2,128], index: 9, kind: output, shape index: {}]
  %s10 = sld [smem:[#allocation0]]
  $region46: #{tpu_custom_call.1} parent=0
    _
  %s12 = ssub.s32 1, %s10
  %s13 = scalar_select 0, %s12, %s10
  $region1: #{tpu_custom_call.1} parent=0
    #allocation2 [shape = 'u8[1024]{0}', space=vmem, size = 0x400, scoped, tag = 'output window, operand 0, single buffered']
    #allocation3 [shape = 's32[1]{0}', space=sflag, size = 0x4, scoped, tag = 'scoped memory for tpu_custom_call.1']
    %14 = vsyncpa [#allocation3], 0
    // Predicated region
    $region2: #{tpu_custom_call.1} parent=1 // pred_check
      _
    $region3: #{tpu_custom_call.1} parent=1 // pred_check_branch
      %16 = sbr.rel (0) target = $region5
    $region4: #{tpu_custom_call.1} parent=1 // pred_region
      _
    $region5: #{tpu_custom_call.1} parent=1 // pred_fallthru
      _
    // Predicated region
    $region6: #{tpu_custom_call.1} parent=1 // pred_check
      _
    $region7: #{tpu_custom_call.1} parent=1 // pred_check_branch
      %18 = sbr.rel (0) target = $region9
    $region8: #{tpu_custom_call.1} parent=1 // pred_region
      _
    $region9: #{tpu_custom_call.1} parent=1 // pred_fallthru
      _
    // Predicated region
    $region10: #{tpu_custom_call.1} parent=1 // pred_check
      _
    $region11: #{tpu_custom_call.1} parent=1 // pred_check_branch
      %20 = sbr.rel (0) target = $region13
    $region12: #{tpu_custom_call.1} parent=1 // pred_region
      _
    $region13: #{tpu_custom_call.1} parent=1 // pred_fallthru
      _
    // Predicated region
    $region14: #{tpu_custom_call.1} parent=1 // pred_check
      _
    $region15: #{tpu_custom_call.1} parent=1 // pred_check_branch
      %22 = sbr.rel (0) target = $region17
    $region16: #{tpu_custom_call.1} parent=1 // pred_region
      _
    $region17: #{tpu_custom_call.1} parent=1 // pred_fallthru
      _
    // Predicated region
    $region18: #{tpu_custom_call.1} parent=1 // pred_check
      _
    $region19: #{tpu_custom_call.1} parent=1 // pred_check_branch
      %24 = sbr.rel (0) target = $region21
    $region20: #{tpu_custom_call.1} parent=1 // pred_region
      _
    $region21: #{tpu_custom_call.1} parent=1 // pred_fallthru
      _
    // Predicated region
    $region22: #{tpu_custom_call.1} parent=1 // pred_check
      _
    $region23: #{tpu_custom_call.1} parent=1 // pred_check_branch
      %26 = sbr.rel (0) target = $region25
    $region24: #{tpu_custom_call.1} parent=1 // pred_region
      _
    $region25: #{tpu_custom_call.1} parent=1 // pred_fallthru
      _
    // Predicated region
    $region26: #{tpu_custom_call.1} parent=1 // pred_check
      _
    $region27: #{tpu_custom_call.1} parent=1 // pred_check_branch
      %28 = sbr.rel (0) target = $region29
    $region28: #{tpu_custom_call.1} parent=1 // pred_region
      _
    $region29: #{tpu_custom_call.1} parent=1 // pred_fallthru
      _
    // Predicated region
    $region30: #{tpu_custom_call.1} parent=1 // pred_check
      _
    $region31: #{tpu_custom_call.1} parent=1 // pred_check_branch
      %30 = sbr.rel (0) target = $region33
    $region32: #{tpu_custom_call.1} parent=1 // pred_region
      _
    $region33: #{tpu_custom_call.1} parent=1 // pred_fallthru
      _
    // Predicated region
    $region34: #{tpu_custom_call.1} parent=1 // pred_check
      _
    $region35: #{tpu_custom_call.1} parent=1 // pred_check_branch
      %32 = sbr.rel (0) target = $region37
    $region36: #{tpu_custom_call.1} parent=1 // pred_region
      _
    $region37: #{tpu_custom_call.1} parent=1 // pred_fallthru
      _
    %v33 = vld [vmem:[%s0] sm:$0x3]
    %v34 = vld [vmem:[%s1] sm:$0xff]
    %v35 = vld [vmem:[%s1 + $0x8] sm:$0xff]
    %v36 = vld [vmem:[%s1 + $0x10] sm:$0xff]
    %v37 = vld [vmem:[%s1 + $0x18] sm:$0xff]
    %v38 = vld [vmem:[%s2] sm:$0x1]
    %v40 = vlaneseq
    %v41 = vshrl.u32 %v40, 7
    %v42 = vsub.s32 0, %v41
    %v43 = vrot.slane %v38, %v42
    %vm45 = vcmask 261120
    %v47 = vsel %vm45, %v33, 0
    %49 = vmatprep.subr.mxu0 0.0
    %50 = vmatpush1.msra.mxu0 %v34
    %51 = vmatprep.subr.mxu0 0.0
    %52 = vmatpush1.msra.mxu0 %v35
    %53 = vmatprep.subr.mxu0 0.0
    %54 = vmatpush1.msra.mxu0 %v36
    %55 = vmatprep.subr.mxu0 0.0
    %56 = vmatpush1.msra.mxu0 %v37
    %57 = vmatprep.subr.mxu0 0.0
    %58 = vmatpush1.msra.mxu0 0.0
    %59 = vmatprep.subr.mxu0 0.0
    %60 = vmatpush1.msra.mxu0 0.0
    %61 = vmatprep.subr.mxu0 0.0
    %62 = vmatpush1.msra.mxu0 0.0
    %63 = vmatprep.subr.mxu0 0.0
    %64 = vmatpush1.msra.mxu0 0.0
    %65 = vmatprep.subr.mxu0 0.0
    %66 = vmatpush1.msra.mxu0 0.0
    %67 = vmatprep.subr.mxu0 0.0
    %68 = vmatpush1.msra.mxu0 0.0
    %69 = vmatprep.subr.mxu0 0.0
    %70 = vmatpush1.msra.mxu0 0.0
    %71 = vmatprep.subr.mxu0 0.0
    %72 = vmatpush1.msra.mxu0 0.0
    %73 = vmatprep.subr.mxu0 0.0
    %74 = vmatpush1.msra.mxu0 0.0
    %75 = vmatprep.subr.mxu0 0.0
    %76 = vmatpush1.msra.mxu0 0.0
    %77 = vmatprep.subr.mxu0 0.0
    %78 = vmatpush1.msra.mxu0 0.0
    %79 = vmatprep.subr.mxu0 0.0
    %80 = vmatpush1.msra.mxu0 0.0
    %81 = vmatprep.subr.mxu0 0.0
    %82 = vmatpush1.msra.mxu0 0.0
    %83 = vmatprep.subr.mxu0 0.0
    %84 = vmatpush1.msra.mxu0 0.0
    %85 = vmatprep.subr.mxu0 0.0
    %86 = vmatpush1.msra.mxu0 0.0
    %87 = vmatprep.subr.mxu0 0.0
    %88 = vmatpush1.msra.mxu0 0.0
    %89 = vmatprep.subr.mxu0 0.0
    %90 = vmatpush1.msra.mxu0 0.0
    %91 = vmatprep.subr.mxu0 0.0
    %92 = vmatpush1.msra.mxu0 0.0
    %93 = vmatprep.subr.mxu0 0.0
    %94 = vmatpush1.msra.mxu0 0.0
    %95 = vmatprep.subr.mxu0 0.0
    %96 = vmatpush1.msra.mxu0 0.0
    %97 = vmatprep.subr.mxu0 0.0
    %98 = vmatpush1.msra.mxu0 0.0
    %99 = vmatprep.subr.mxu0 0.0
    %100 = vmatpush1.msra.mxu0 0.0
    %101 = vmatprep.subr.mxu0 0.0
    %102 = vmatpush1.msra.mxu0 0.0
    %103 = vmatprep.subr.mxu0 0.0
    %104 = vmatpush1.msra.mxu0 0.0
    %105 = vmatprep.subr.mxu0 0.0
    %106 = vmatpush1.msra.mxu0 0.0
    %107 = vmatprep.subr.mxu0 0.0
    %108 = vmatpush1.msra.mxu0 0.0
    %109 = vmatprep.subr.mxu0 0.0
    %110 = vmatpush1.msra.mxu0 0.0
    %111 = vmatprep.subr.mxu0 0.0
    %112 = vmatpush1.msra.mxu0 0.0
    %113 = vmatprep.mubr.f32.mxu0 0.0
    %114 = vmatmul.mubr.f32.gmra.mrb[0].mxu0 %v47
    %v115 = vpop.f32.mrb[0].mxu0
    %v116 = vadd.f32 %v43, %v115
    %v117 = vpop.f32.mrb[0].mxu0
    %118 = vdwg.mxu0
    %v119 = vmax.f32 %v116, 0.0
    %v120 = vld [vmem:[%s3] sm:$0xff]
    %v121 = vld [vmem:[%s3 + $0x8] sm:$0xff]
    %v122 = vld [vmem:[%s3 + $0x10] sm:$0xff]
    %v123 = vld [vmem:[%s3 + $0x18] sm:$0xff]
    %v124 = vld [vmem:[%s3 + $0x20] sm:$0xff]
    %v125 = vld [vmem:[%s3 + $0x28] sm:$0xff]
    %v126 = vld [vmem:[%s3 + $0x30] sm:$0xff]
    %v127 = vld [vmem:[%s3 + $0x38] sm:$0xff]
    %v128 = vld [vmem:[%s4] sm:$0x1]
    %v130 = vlaneseq
    %v131 = vshrl.u32 %v130, 7
    %v132 = vsub.s32 0, %v131
    %v133 = vrot.slane %v128, %v132
    %vm135 = vcmask 523264
    %v137 = vsel %vm135, %v119, 0
    %139 = vmatprep.subr.mxu0 0.0
    %140 = vmatpush1.msra.mxu0 %v120
    %141 = vmatprep.subr.mxu0 0.0
    %142 = vmatpush1.msra.mxu0 %v121
    %143 = vmatprep.subr.mxu0 0.0
    %144 = vmatpush1.msra.mxu0 %v122
    %145 = vmatprep.subr.mxu0 0.0
    %146 = vmatpush1.msra.mxu0 %v123
    %147 = vmatprep.subr.mxu0 0.0
    %148 = vmatpush1.msra.mxu0 %v124
    %149 = vmatprep.subr.mxu0 0.0
    %150 = vmatpush1.msra.mxu0 %v125
    %151 = vmatprep.subr.mxu0 0.0
    %152 = vmatpush1.msra.mxu0 %v126
    %153 = vmatprep.subr.mxu0 0.0
    %154 = vmatpush1.msra.mxu0 %v127
    %155 = vmatprep.subr.mxu0 0.0
    %156 = vmatpush1.msra.mxu0 0.0
    %157 = vmatprep.subr.mxu0 0.0
    %158 = vmatpush1.msra.mxu0 0.0
    %159 = vmatprep.subr.mxu0 0.0
    %160 = vmatpush1.msra.mxu0 0.0
    %161 = vmatprep.subr.mxu0 0.0
    %162 = vmatpush1.msra.mxu0 0.0
    %163 = vmatprep.subr.mxu0 0.0
    %164 = vmatpush1.msra.mxu0 0.0
    %165 = vmatprep.subr.mxu0 0.0
    %166 = vmatpush1.msra.mxu0 0.0
    %167 = vmatprep.subr.mxu0 0.0
    %168 = vmatpush1.msra.mxu0 0.0
    %169 = vmatprep.subr.mxu0 0.0
    %170 = vmatpush1.msra.mxu0 0.0
    %171 = vmatprep.subr.mxu0 0.0
    %172 = vmatpush1.msra.mxu0 0.0
    %173 = vmatprep.subr.mxu0 0.0
    %174 = vmatpush1.msra.mxu0 0.0
    %175 = vmatprep.subr.mxu0 0.0
    %176 = vmatpush1.msra.mxu0 0.0
    %177 = vmatprep.subr.mxu0 0.0
    %178 = vmatpush1.msra.mxu0 0.0
    %179 = vmatprep.subr.mxu0 0.0
    %180 = vmatpush1.msra.mxu0 0.0
    %181 = vmatprep.subr.mxu0 0.0
    %182 = vmatpush1.msra.mxu0 0.0
    %183 = vmatprep.subr.mxu0 0.0
    %184 = vmatpush1.msra.mxu0 0.0
    %185 = vmatprep.subr.mxu0 0.0
    %186 = vmatpush1.msra.mxu0 0.0
    %187 = vmatprep.subr.mxu0 0.0
    %188 = vmatpush1.msra.mxu0 0.0
    %189 = vmatprep.subr.mxu0 0.0
    %190 = vmatpush1.msra.mxu0 0.0
    %191 = vmatprep.subr.mxu0 0.0
    %192 = vmatpush1.msra.mxu0 0.0
    %193 = vmatprep.subr.mxu0 0.0
    %194 = vmatpush1.msra.mxu0 0.0
    %195 = vmatprep.subr.mxu0 0.0
    %196 = vmatpush1.msra.mxu0 0.0
    %197 = vmatprep.subr.mxu0 0.0
    %198 = vmatpush1.msra.mxu0 0.0
    %199 = vmatprep.subr.mxu0 0.0
    %200 = vmatpush1.msra.mxu0 0.0
    %201 = vmatprep.subr.mxu0 0.0
    %202 = vmatpush1.msra.mxu0 0.0
    %203 = vmatprep.mubr.f32.mxu0 0.0
    %204 = vmatmul.mubr.f32.gmra.mrb[0].mxu0 %v137
    %v205 = vpop.f32.mrb[0].mxu0
    %v206 = vadd.f32 %v133, %v205
    %v207 = vpop.f32.mrb[0].mxu0
    %208 = vdwg.mxu0
    %v209 = vld [vmem:[%s5] sm:$0xff]
    %v210 = vld [vmem:[%s5 + $0x8] sm:$0xff]
    %v211 = vld [vmem:[%s5 + $0x10] sm:$0xff]
    %v212 = vld [vmem:[%s5 + $0x18] sm:$0xff]
    %v213 = vld [vmem:[%s6] sm:$0x1]
    %v215 = vlaneseq
    %v216 = vshrl.u32 %v215, 7
    %v217 = vsub.s32 0, %v216
    %v218 = vrot.slane %v213, %v217
    %220 = vmatprep.subr.mxu0 0.0
    %221 = vmatpush1.msra.mxu0 %v209
    %222 = vmatprep.subr.mxu0 0.0
    %223 = vmatpush1.msra.mxu0 %v210
    %224 = vmatprep.subr.mxu0 0.0
    %225 = vmatpush1.msra.mxu0 %v211
    %226 = vmatprep.subr.mxu0 0.0
    %227 = vmatpush1.msra.mxu0 %v212
    %228 = vmatprep.subr.mxu0 0.0
    %229 = vmatpush1.msra.mxu0 0.0
    %230 = vmatprep.subr.mxu0 0.0
    %231 = vmatpush1.msra.mxu0 0.0
    %232 = vmatprep.subr.mxu0 0.0
    %233 = vmatpush1.msra.mxu0 0.0
    %234 = vmatprep.subr.mxu0 0.0
    %235 = vmatpush1.msra.mxu0 0.0
    %236 = vmatprep.subr.mxu0 0.0
    %237 = vmatpush1.msra.mxu0 0.0
    %238 = vmatprep.subr.mxu0 0.0
    %239 = vmatpush1.msra.mxu0 0.0
    %240 = vmatprep.subr.mxu0 0.0
    %241 = vmatpush1.msra.mxu0 0.0
    %242 = vmatprep.subr.mxu0 0.0
    %243 = vmatpush1.msra.mxu0 0.0
    %244 = vmatprep.subr.mxu0 0.0
    %245 = vmatpush1.msra.mxu0 0.0
    %246 = vmatprep.subr.mxu0 0.0
    %247 = vmatpush1.msra.mxu0 0.0
    %248 = vmatprep.subr.mxu0 0.0
    %249 = vmatpush1.msra.mxu0 0.0
    %250 = vmatprep.subr.mxu0 0.0
    %251 = vmatpush1.msra.mxu0 0.0
    %252 = vmatprep.subr.mxu0 0.0
    %253 = vmatpush1.msra.mxu0 0.0
    %254 = vmatprep.subr.mxu0 0.0
    %255 = vmatpush1.msra.mxu0 0.0
    %256 = vmatprep.subr.mxu0 0.0
    %257 = vmatpush1.msra.mxu0 0.0
    %258 = vmatprep.subr.mxu0 0.0
    %259 = vmatpush1.msra.mxu0 0.0
    %260 = vmatprep.subr.mxu0 0.0
    %261 = vmatpush1.msra.mxu0 0.0
    %262 = vmatprep.subr.mxu0 0.0
    %263 = vmatpush1.msra.mxu0 0.0
    %264 = vmatprep.subr.mxu0 0.0
    %265 = vmatpush1.msra.mxu0 0.0
    %266 = vmatprep.subr.mxu0 0.0
    %267 = vmatpush1.msra.mxu0 0.0
    %268 = vmatprep.subr.mxu0 0.0
    %269 = vmatpush1.msra.mxu0 0.0
    %270 = vmatprep.subr.mxu0 0.0
    %271 = vmatpush1.msra.mxu0 0.0
    %272 = vmatprep.subr.mxu0 0.0
    %273 = vmatpush1.msra.mxu0 0.0
    %274 = vmatprep.subr.mxu0 0.0
    %275 = vmatpush1.msra.mxu0 0.0
    %276 = vmatprep.subr.mxu0 0.0
    %277 = vmatpush1.msra.mxu0 0.0
    %278 = vmatprep.subr.mxu0 0.0
    %279 = vmatpush1.msra.mxu0 0.0
    %280 = vmatprep.subr.mxu0 0.0
    %281 = vmatpush1.msra.mxu0 0.0
    %282 = vmatprep.subr.mxu0 0.0
    %283 = vmatpush1.msra.mxu0 0.0
    %284 = vmatprep.mubr.f32.mxu0 0.0
    %285 = vmatmul.mubr.f32.gmra.mrb[0].mxu0 %v47
    %v286 = vpop.f32.mrb[0].mxu0
    %v287 = vadd.f32 %v218, %v286
    %v288 = vpop.f32.mrb[0].mxu0
    %289 = vdwg.mxu0
    %vm290 = vcmask 123904
    %v291 = vsel %vm290, %v206, -inf
    %292 = vmax.xlane.f32.xlu0 %v291
    %v293 = vpop.xlane.xlu0 %292
    %v294 = vsub.f32 %v206, %v293
    %v295 = vmul.f32 %v294, 1.442695
    %v296 = vpow.pop %v295
    %v297 = vsel %vm290, %v296, 0.0
    %298 = vadd.xlane.f32.xlu0 %v297
    %v299 = vpop.xlane.xlu0 %298
    %v300 = vlog2.pop %v299
    %v301 = vmul.f32 %v300, 0.6931472
    %v302 = vadd.f32 %v301, %v293
    %v303 = vlaneseq
    %v304 = vand.u32 %v303, 127
    %v305 = vld [vmem:[%s7] sm:$0x3]
    %306 = vset.pattern.permute.xlu0 0
    %307 = vperm.xlu0 %306, %v305
    %v308 = vpop.permute.xlu0 %307
    %vm309 = vcmp.eq.s32.totalorder %v304, %v308
    %v310 = vsel %vm309, %v206, 0.0
    %v311 = vsel %vm290, %v310, 0.0
    %312 = vadd.xlane.f32.xlu0 %v311
    %v313 = vpop.xlane.xlu0 %312
    %v314 = vsub.f32 %v302, %v313
    %v315 = vld [vmem:[%s8] sm:$0x3]
    %v316 = vsub.f32 %v287, %v315
    %v317 = vmul.f32 %v316, %v316
    %319 = vrot.lane.b32.xlu0 %v287, 17
    %v320 = vpop.permute.xlu0 %319
    %323 = vrot.lane.b32.xlu0 %v317, 25
    %v324 = vpop.permute.xlu0 %323
    %vm326 = vcmask 130048
    %v327 = vsel %vm326, %v206, %v314
    %vm328 = vcmask 138240
    %v329 = vsel %vm328, %v327, %v320
    %vm330 = vcmask 203776
    %v331 = vsel %vm330, %v329, %v324
    %vm332 = vcmask 269312
    %v333 = vsel %vm332, %v331, 0.0
    %334 = vst [vmem:[#allocation2] sm:$0x3] %v333
    // Predicated region
    $region38: #{tpu_custom_call.1} parent=1 // pred_check
      _
    $region39: #{tpu_custom_call.1} parent=1 // pred_check_branch
      %336 = sbr.rel (0) target = $region41
    $region40: #{tpu_custom_call.1} parent=1 // pred_region
      %s338 = ssub.s32 32, 32
      %339 = vsyncadd [#allocation3], %s338
      %s341 = sshll.u32 [#allocation2], 4
      %s342 = int_to_ptr.vmem [resolvable:$true] %s341
      %344 = dma.vmem_to_hbm [thread:$0]  %s342, 32, %s9, [#allocation3]
    $region41: #{tpu_custom_call.1} parent=1 // pred_fallthru
      _
    // Predicated region
    $region42: #{tpu_custom_call.1} parent=1 // pred_check
      _
    $region43: #{tpu_custom_call.1} parent=1 // pred_check_branch
      %346 = sbr.rel (0) target = $region45
    $region44: #{tpu_custom_call.1} parent=1 // pred_region
      %347 = dma.done [#allocation3], 32
    $region45: #{tpu_custom_call.1} parent=1 // pred_fallthru
      _
    %348 = vsyncpa [#allocation3], 1

</llo_original>
